<compile_context>
chip_gen: v6e
topology: v6e:2x2x1
jax: 0.10.0
libtpu: 0.0.40
codegen_flags: <defaults>
</compile_context>

<pallas_src>
import math

import jax
import jax.numpy as jnp
from jax.experimental import pallas as pl
from jax.experimental.pallas import tpu as pltpu

_INV_SQRT2 = 1.0 / math.sqrt(2.0)
_MXU_DTYPE = jnp.bfloat16  # MXU operand dtype; accumulation stays float32.


# ----------------------------------------------------------------------------
# Fused kernel: all mixing layers in one body, activations resident in VMEM.
#   refs = [x0, low_1..low_n, (w1t,b1,w2t,b2) x n, out_1..out_n]
#   all activation refs are (T_i, TR) with rows of B*C on the lane axis.
# ----------------------------------------------------------------------------
def _make_fused_kernel(n_mix):
    def kernel(*refs):
        x0_ref = refs[0]
        low_refs = refs[1:1 + n_mix]
        w_refs = refs[1 + n_mix:1 + 5 * n_mix]
        out_refs = refs[1 + 5 * n_mix:]

        h = x0_ref[...]                                  # (T_0, TR) f32
        for i in range(n_mix):                           # static unrolled loop
            w1t = w_refs[4 * i + 0][...]                 # (T_{i+1}, T_i)   bf16
            b1 = w_refs[4 * i + 1][...]                  # (T_{i+1}, 1)     f32
            w2t = w_refs[4 * i + 2][...]                 # (T_{i+1}, T_{i+1}) bf16
            b2 = w_refs[4 * i + 3][...]                  # (T_{i+1}, 1)     f32

            # (x @ W1)^T = W1^T @ x^T  -> MXU, f32 accumulation
            z = jnp.dot(w1t, h.astype(w1t.dtype),
                        preferred_element_type=jnp.float32) + b1
            # exact (erf) GELU in f32, matching torch.nn.GELU() default
            z = 0.5 * z * (1.0 + jax.lax.erf(z * _INV_SQRT2))
            y = jnp.dot(w2t, z.astype(w2t.dtype),
                        preferred_element_type=jnp.float32) + b2
            h = low_refs[i][...] + y                     # residual onto low res
            out_refs[i][...] = h.astype(out_refs[i].dtype)

    return kernel


def _pick_row_tile(R):
    # Big-but-bounded lane tiles; fall back to full extent when R is not a
    # multiple of 128 (blocks must be 128-divisible or full-extent on lanes).
    for tr in (512, 256, 128):
        if R % tr == 0:
            return tr
    return R


# ----------------------------------------------------------------------------
# Module-level forward: layout plumbing in the wrapper, hot path in the kernel.
# ----------------------------------------------------------------------------
def multi_scale_season_mixing(season_list, params):
    """season_list[i]: (B, C, T_i).  Returns list of (B, T_i, C) arrays."""
    B, C, _ = season_list[0].shape
    n = len(season_list)
    n_mix = n - 1
    assert len(params) == n_mix

    R = B * C
    TR = _pick_row_tile(R)
    grid = (R // TR,)
    t_sizes = [s.shape[-1] for s in season_list]

    # (B, C, T) -> (T, B*C): put the large row dim on the lane axis.
    def to_tr(a):
        return jnp.transpose(a, (2, 0, 1)).reshape(a.shape[-1], R)

    x0 = to_tr(season_list[0])
    lows = [to_tr(season_list[i]) for i in range(1, n)]

    # Weights transposed (out, in) so the kernel does W^T @ x^T; MXU dtype bf16.
    w_inputs, w_specs = [], []
    for i in range(n_mix):
        w1, b1, w2, b2 = params[i]
        w1t = jnp.asarray(w1.T, _MXU_DTYPE)
        b1c = jnp.asarray(jnp.reshape(b1, (-1, 1)), jnp.float32)
        w2t = jnp.asarray(w2.T, _MXU_DTYPE)
        b2c = jnp.asarray(jnp.reshape(b2, (-1, 1)), jnp.float32)
        for w in (w1t, b1c, w2t, b2c):
            w_inputs.append(w)
            # Constant block index -> stays VMEM-resident across the row grid.
            w_specs.append(pl.BlockSpec(w.shape, lambda r: (0, 0)))

    in_specs = (
        [pl.BlockSpec((t_sizes[0], TR), lambda r: (0, r))]
        + [pl.BlockSpec((t_sizes[i], TR), lambda r: (0, r)) for i in range(1, n)]
        + w_specs
    )
    out_specs = [pl.BlockSpec((t_sizes[i + 1], TR), lambda r: (0, r))
                 for i in range(n_mix)]
    out_shape = [jax.ShapeDtypeStruct((t_sizes[i + 1], R), jnp.float32)
                 for i in range(n_mix)]

    # Advisory cost estimate for XLA scheduling around the custom call.
    flops, trans = 0, 0
    for i in range(n_mix):
        t_in, t_out = t_sizes[i], t_sizes[i + 1]
        flops += 2 * R * (t_in * t_out + t_out * t_out) + 6 * R * t_out
        trans += R * t_out
    bytes_accessed = (
        x0.size * 4
        + sum(l.size * 4 for l in lows)
        + sum(int(w.size) * w.dtype.itemsize for w in w_inputs)
        + sum(R * t_sizes[i + 1] * 4 for i in range(n_mix))
    )

    fused = pl.pallas_call(
        _make_fused_kernel(n_mix),
        out_shape=out_shape,
        grid=grid,
        in_specs=in_specs,
        out_specs=out_specs,
        compiler_params=pltpu.CompilerParams(
            dimension_semantics=("parallel",),      # shard rows across TCs (v7x)
            vmem_limit_bytes=48 * 1024 * 1024,      # explicit, fits v7x's 64 MiB
        ),
        cost_estimate=pl.CostEstimate(
            flops=int(flops),
            transcendentals=int(trans),
            bytes_accessed=int(bytes_accessed),
        ),
    )
    mixed = fused(x0, *lows, *w_inputs)

    # Post-process to the caller's (B, T, C) layout (leading-dim transpose only).
    outs = [jnp.transpose(season_list[0], (0, 2, 1))]
    for i in range(n_mix):
        t_out = t_sizes[i + 1]
        outs.append(jnp.transpose(mixed[i].reshape(t_out, B, C), (1, 0, 2)))
    return outs


# ----------------------------------------------------------------------------
# Pure-JAX f32 reference (for correctness check).
# ----------------------------------------------------------------------------
def _reference(season_list, params):
    out_high = season_list[0]
    out_low = season_list[1]
    outs = [jnp.transpose(out_high, (0, 2, 1))]
    n = len(season_list)
    for i in range(n - 1):
        w1, b1, w2, b2 = params[i]
        h = out_high @ w1 + b1
        h = 0.5 * h * (1.0 + jax.lax.erf(h / math.sqrt(2.0)))
        res = h @ w2 + b2
        out_low = out_low + res
        out_high = out_low
        if i + 2 <= n - 1:
            out_low = season_list[i + 2]
        outs.append(jnp.transpose(out_high, (0, 2, 1)))
    return outs


# ----------------------------------------------------------------------------
# Deterministic parameter init (PyTorch nn.Linear-style uniform bounds).
# ----------------------------------------------------------------------------
def init_params(key, seq_len, down_sampling_window, down_sampling_layers):
    params = []
    for i in range(down_sampling_layers):
        d_in = seq_len // down_sampling_window ** i
        d_out = seq_len // down_sampling_window ** (i + 1)
        key, k1, k2, k3, k4 = jax.random.split(key, 5)
        bnd1 = 1.0 / math.sqrt(d_in)
        bnd2 = 1.0 / math.sqrt(d_out)
        w1 = jax.random.uniform(k1, (d_in, d_out), jnp.float32, -bnd1, bnd1)
        b1 = jax.random.uniform(k2, (1, d_out), jnp.float32, -bnd1, bnd1)
        w2 = jax.random.uniform(k3, (d_out, d_out), jnp.float32, -bnd2, bnd2)
        b2 = jax.random.uniform(k4, (1, d_out), jnp.float32, -bnd2, bnd2)
        params.append((w1, b1, w2, b2))
    return params


if __name__ == "__main__":
    B, C = 2, 4
    seq_len, dsw, layers = 16, 2, 3

    key = jax.random.PRNGKey(0)
    key, pkey = jax.random.split(key)
    params = init_params(pkey, seq_len, dsw, layers)

    season_list = []
    for i in range(layers + 1):
        key, sk = jax.random.split(key)
        t_i = seq_len // dsw ** i
        season_list.append(jax.random.normal(sk, (B, C, t_i), jnp.float32))

    outs = multi_scale_season_mixing(season_list, params)
    outs = [jax.block_until_ready(o) for o in outs]

    refs = _reference(season_list, params)
    for o, r in zip(outs, refs):
        assert o.shape == r.shape, (o.shape, r.shape)
        # bf16 MXU operands vs f32 reference -> allow small mixed-precision drift
        err = float(jnp.max(jnp.abs(o - r)))
        tol = 2e-2 + 2e-2 * float(jnp.max(jnp.abs(r)))
        assert err <= tol, (err, tol)

    print("KERNEL_OK")
</pallas_src>

<mosaic_0001>
module attributes {stable_mosaic.version = 11 : i64} {
  func.func @kernel(%arg0: i32, %arg1: memref<16x8xf32, #tpu.memory_space<vmem>>, %arg2: memref<8x8xf32, #tpu.memory_space<vmem>>, %arg3: memref<4x8xf32, #tpu.memory_space<vmem>>, %arg4: memref<2x8xf32, #tpu.memory_space<vmem>>, %arg5: memref<8x16xbf16, #tpu.memory_space<vmem>>, %arg6: memref<8x1xf32, #tpu.memory_space<vmem>>, %arg7: memref<8x8xbf16, #tpu.memory_space<vmem>>, %arg8: memref<8x1xf32, #tpu.memory_space<vmem>>, %arg9: memref<4x8xbf16, #tpu.memory_space<vmem>>, %arg10: memref<4x1xf32, #tpu.memory_space<vmem>>, %arg11: memref<4x4xbf16, #tpu.memory_space<vmem>>, %arg12: memref<4x1xf32, #tpu.memory_space<vmem>>, %arg13: memref<2x4xbf16, #tpu.memory_space<vmem>>, %arg14: memref<2x1xf32, #tpu.memory_space<vmem>>, %arg15: memref<2x2xbf16, #tpu.memory_space<vmem>>, %arg16: memref<2x1xf32, #tpu.memory_space<vmem>>, %arg17: memref<8x8xf32, #tpu.memory_space<vmem>>, %arg18: memref<4x8xf32, #tpu.memory_space<vmem>>, %arg19: memref<2x8xf32, #tpu.memory_space<vmem>>) attributes {dimension_semantics = [#tpu.dimension_semantics<parallel>], iteration_bounds = array<i64: 1>, scalar_prefetch = 0 : i64, scratch_operands = 0 : i64, tpu.core_type = #tpu.core_type<tc>, window_params = [{transform_indices = @transform_0, window_bounds = array<i64: 16, 8>}, {transform_indices = @transform_1, window_bounds = array<i64: 8, 8>}, {transform_indices = @transform_2, window_bounds = array<i64: 4, 8>}, {transform_indices = @transform_3, window_bounds = array<i64: 2, 8>}, {pipeline_mode = #tpu.pipeline_mode<synchronous>, transform_indices = @transform_4, window_bounds = array<i64: 8, 16>}, {pipeline_mode = #tpu.pipeline_mode<synchronous>, transform_indices = @transform_5, window_bounds = array<i64: 8, 1>}, {pipeline_mode = #tpu.pipeline_mode<synchronous>, transform_indices = @transform_6, window_bounds = array<i64: 8, 8>}, {pipeline_mode = #tpu.pipeline_mode<synchronous>, transform_indices = @transform_7, window_bounds = array<i64: 8, 1>}, {pipeline_mode = #tpu.pipeline_mode<synchronous>, transform_indices = @transform_8, window_bounds = array<i64: 4, 8>}, {pipeline_mode = #tpu.pipeline_mode<synchronous>, transform_indices = @transform_9, window_bounds = array<i64: 4, 1>}, {pipeline_mode = #tpu.pipeline_mode<synchronous>, transform_indices = @transform_10, window_bounds = array<i64: 4, 4>}, {pipeline_mode = #tpu.pipeline_mode<synchronous>, transform_indices = @transform_11, window_bounds = array<i64: 4, 1>}, {pipeline_mode = #tpu.pipeline_mode<synchronous>, transform_indices = @transform_12, window_bounds = array<i64: 2, 4>}, {pipeline_mode = #tpu.pipeline_mode<synchronous>, transform_indices = @transform_13, window_bounds = array<i64: 2, 1>}, {pipeline_mode = #tpu.pipeline_mode<synchronous>, transform_indices = @transform_14, window_bounds = array<i64: 2, 2>}, {pipeline_mode = #tpu.pipeline_mode<synchronous>, transform_indices = @transform_15, window_bounds = array<i64: 2, 1>}, {transform_indices = @transform_16, window_bounds = array<i64: 8, 8>}, {transform_indices = @transform_17, window_bounds = array<i64: 4, 8>}, {transform_indices = @transform_18, window_bounds = array<i64: 2, 8>}]} {
    %c0 = arith.constant 0 : index
    %c0_0 = arith.constant 0 : index
    %0 = vector.load %arg1[%c0, %c0_0] : memref<16x8xf32, #tpu.memory_space<vmem>>, vector<16x8xf32>
    %c0_1 = arith.constant 0 : index
    %c0_2 = arith.constant 0 : index
    %1 = vector.load %arg5[%c0_1, %c0_2] : memref<8x16xbf16, #tpu.memory_space<vmem>>, vector<8x16xbf16>
    %c0_3 = arith.constant 0 : index
    %c0_4 = arith.constant 0 : index
    %2 = vector.load %arg6[%c0_3, %c0_4] : memref<8x1xf32, #tpu.memory_space<vmem>>, vector<8x1xf32>
    %c0_5 = arith.constant 0 : index
    %c0_6 = arith.constant 0 : index
    %3 = vector.load %arg7[%c0_5, %c0_6] : memref<8x8xbf16, #tpu.memory_space<vmem>>, vector<8x8xbf16>
    %c0_7 = arith.constant 0 : index
    %c0_8 = arith.constant 0 : index
    %4 = vector.load %arg8[%c0_7, %c0_8] : memref<8x1xf32, #tpu.memory_space<vmem>>, vector<8x1xf32>
    %5 = arith.truncf %0 : vector<16x8xf32> to vector<16x8xbf16>
    %cst = arith.constant dense<0.000000e+00> : vector<8x8xf32>
    %6 = tpu.matmul %1, %5, %cst {dimension_numbers = #tpu.dot_dimension_numbers<[1], [0], [0], [1], [0, 0, 1, 1], [], []>} : vector<8x16xbf16>, vector<16x8xbf16>, vector<8x8xf32> -> vector<8x8xf32>
    %7 = vector.broadcast %2 : vector<8x1xf32> to vector<8x8xf32>
    %8 = arith.addf %6, %7 : vector<8x8xf32>
    %cst_9 = arith.constant 5.000000e-01 : f32
    %9 = vector.broadcast %cst_9 : f32 to vector<8x8xf32>
    %10 = arith.mulf %9, %8 : vector<8x8xf32>
    %cst_10 = arith.constant 0.707106769 : f32
    %11 = vector.broadcast %cst_10 : f32 to vector<8x8xf32>
    %12 = arith.mulf %8, %11 : vector<8x8xf32>
    %13 = math.erf %12 : vector<8x8xf32>
    %cst_11 = arith.constant 1.000000e+00 : f32
    %14 = vector.broadcast %cst_11 : f32 to vector<8x8xf32>
    %15 = arith.addf %14, %13 : vector<8x8xf32>
    %16 = arith.mulf %10, %15 : vector<8x8xf32>
    %17 = arith.truncf %16 : vector<8x8xf32> to vector<8x8xbf16>
    %cst_12 = arith.constant dense<0.000000e+00> : vector<8x8xf32>
    %18 = tpu.matmul %3, %17, %cst_12 {dimension_numbers = #tpu.dot_dimension_numbers<[1], [0], [0], [1], [0, 0, 1, 1], [], []>} : vector<8x8xbf16>, vector<8x8xbf16>, vector<8x8xf32> -> vector<8x8xf32>
    %19 = vector.broadcast %4 : vector<8x1xf32> to vector<8x8xf32>
    %20 = arith.addf %18, %19 : vector<8x8xf32>
    %c0_13 = arith.constant 0 : index
    %c0_14 = arith.constant 0 : index
    %21 = vector.load %arg2[%c0_13, %c0_14] : memref<8x8xf32, #tpu.memory_space<vmem>>, vector<8x8xf32>
    %22 = arith.addf %21, %20 : vector<8x8xf32>
    %c0_15 = arith.constant 0 : index
    %c0_16 = arith.constant 0 : index
    %23 = vector.load %arg17[%c0_15, %c0_16] : memref<8x8xf32, #tpu.memory_space<vmem>>, vector<8x8xf32>
    tpu.vector_store %arg17[%c0_15, %c0_16], %22 {strides = array<i32>} : memref<8x8xf32, #tpu.memory_space<vmem>>, vector<8x8xf32>,
    %c0_17 = arith.constant 0 : index
    %c0_18 = arith.constant 0 : index
    %24 = vector.load %arg9[%c0_17, %c0_18] : memref<4x8xbf16, #tpu.memory_space<vmem>>, vector<4x8xbf16>
    %c0_19 = arith.constant 0 : index
    %c0_20 = arith.constant 0 : index
    %25 = vector.load %arg10[%c0_19, %c0_20] : memref<4x1xf32, #tpu.memory_space<vmem>>, vector<4x1xf32>
    %c0_21 = arith.constant 0 : index
    %c0_22 = arith.constant 0 : index
    %26 = vector.load %arg11[%c0_21, %c0_22] : memref<4x4xbf16, #tpu.memory_space<vmem>>, vector<4x4xbf16>
    %c0_23 = arith.constant 0 : index
    %c0_24 = arith.constant 0 : index
    %27 = vector.load %arg12[%c0_23, %c0_24] : memref<4x1xf32, #tpu.memory_space<vmem>>, vector<4x1xf32>
    %28 = arith.truncf %22 : vector<8x8xf32> to vector<8x8xbf16>
    %cst_25 = arith.constant dense<0.000000e+00> : vector<4x8xf32>
    %29 = tpu.matmul %24, %28, %cst_25 {dimension_numbers = #tpu.dot_dimension_numbers<[1], [0], [0], [1], [0, 0, 1, 1], [], []>} : vector<4x8xbf16>, vector<8x8xbf16>, vector<4x8xf32> -> vector<4x8xf32>
    %30 = vector.broadcast %25 : vector<4x1xf32> to vector<4x8xf32>
    %31 = arith.addf %29, %30 : vector<4x8xf32>
    %cst_26 = arith.constant 5.000000e-01 : f32
    %32 = vector.broadcast %cst_26 : f32 to vector<4x8xf32>
    %33 = arith.mulf %32, %31 : vector<4x8xf32>
    %cst_27 = arith.constant 0.707106769 : f32
    %34 = vector.broadcast %cst_27 : f32 to vector<4x8xf32>
    %35 = arith.mulf %31, %34 : vector<4x8xf32>
    %36 = math.erf %35 : vector<4x8xf32>
    %cst_28 = arith.constant 1.000000e+00 : f32
    %37 = vector.broadcast %cst_28 : f32 to vector<4x8xf32>
    %38 = arith.addf %37, %36 : vector<4x8xf32>
    %39 = arith.mulf %33, %38 : vector<4x8xf32>
    %40 = arith.truncf %39 : vector<4x8xf32> to vector<4x8xbf16>
    %cst_29 = arith.constant dense<0.000000e+00> : vector<4x8xf32>
    %41 = tpu.matmul %26, %40, %cst_29 {dimension_numbers = #tpu.dot_dimension_numbers<[1], [0], [0], [1], [0, 0, 1, 1], [], []>} : vector<4x4xbf16>, vector<4x8xbf16>, vector<4x8xf32> -> vector<4x8xf32>
    %42 = vector.broadcast %27 : vector<4x1xf32> to vector<4x8xf32>
    %43 = arith.addf %41, %42 : vector<4x8xf32>
    %c0_30 = arith.constant 0 : index
    %c0_31 = arith.constant 0 : index
    %44 = vector.load %arg3[%c0_30, %c0_31] : memref<4x8xf32, #tpu.memory_space<vmem>>, vector<4x8xf32>
    %45 = arith.addf %44, %43 : vector<4x8xf32>
    %c0_32 = arith.constant 0 : index
    %c0_33 = arith.constant 0 : index
    %46 = vector.load %arg18[%c0_32, %c0_33] : memref<4x8xf32, #tpu.memory_space<vmem>>, vector<4x8xf32>
    tpu.vector_store %arg18[%c0_32, %c0_33], %45 {strides = array<i32>} : memref<4x8xf32, #tpu.memory_space<vmem>>, vector<4x8xf32>,
    %c0_34 = arith.constant 0 : index
    %c0_35 = arith.constant 0 : index
    %47 = vector.load %arg13[%c0_34, %c0_35] : memref<2x4xbf16, #tpu.memory_space<vmem>>, vector<2x4xbf16>
    %c0_36 = arith.constant 0 : index
    %c0_37 = arith.constant 0 : index
    %48 = vector.load %arg14[%c0_36, %c0_37] : memref<2x1xf32, #tpu.memory_space<vmem>>, vector<2x1xf32>
    %c0_38 = arith.constant 0 : index
    %c0_39 = arith.constant 0 : index
    %49 = vector.load %arg15[%c0_38, %c0_39] : memref<2x2xbf16, #tpu.memory_space<vmem>>, vector<2x2xbf16>
    %c0_40 = arith.constant 0 : index
    %c0_41 = arith.constant 0 : index
    %50 = vector.load %arg16[%c0_40, %c0_41] : memref<2x1xf32, #tpu.memory_space<vmem>>, vector<2x1xf32>
    %51 = arith.truncf %45 : vector<4x8xf32> to vector<4x8xbf16>
    %cst_42 = arith.constant dense<0.000000e+00> : vector<2x8xf32>
    %52 = tpu.matmul %47, %51, %cst_42 {dimension_numbers = #tpu.dot_dimension_numbers<[1], [0], [0], [1], [0, 0, 1, 1], [], []>} : vector<2x4xbf16>, vector<4x8xbf16>, vector<2x8xf32> -> vector<2x8xf32>
    %53 = vector.broadcast %48 : vector<2x1xf32> to vector<2x8xf32>
    %54 = arith.addf %52, %53 : vector<2x8xf32>
    %cst_43 = arith.constant 5.000000e-01 : f32
    %55 = vector.broadcast %cst_43 : f32 to vector<2x8xf32>
    %56 = arith.mulf %55, %54 : vector<2x8xf32>
    %cst_44 = arith.constant 0.707106769 : f32
    %57 = vector.broadcast %cst_44 : f32 to vector<2x8xf32>
    %58 = arith.mulf %54, %57 : vector<2x8xf32>
    %59 = math.erf %58 : vector<2x8xf32>
    %cst_45 = arith.constant 1.000000e+00 : f32
    %60 = vector.broadcast %cst_45 : f32 to vector<2x8xf32>
    %61 = arith.addf %60, %59 : vector<2x8xf32>
    %62 = arith.mulf %56, %61 : vector<2x8xf32>
    %63 = arith.truncf %62 : vector<2x8xf32> to vector<2x8xbf16>
    %cst_46 = arith.constant dense<0.000000e+00> : vector<2x8xf32>
    %64 = tpu.matmul %49, %63, %cst_46 {dimension_numbers = #tpu.dot_dimension_numbers<[1], [0], [0], [1], [0, 0, 1, 1], [], []>} : vector<2x2xbf16>, vector<2x8xbf16>, vector<2x8xf32> -> vector<2x8xf32>
    %65 = vector.broadcast %50 : vector<2x1xf32> to vector<2x8xf32>
    %66 = arith.addf %64, %65 : vector<2x8xf32>
    %c0_47 = arith.constant 0 : index
    %c0_48 = arith.constant 0 : index
    %67 = vector.load %arg4[%c0_47, %c0_48] : memref<2x8xf32, #tpu.memory_space<vmem>>, vector<2x8xf32>
    %68 = arith.addf %67, %66 : vector<2x8xf32>
    %c0_49 = arith.constant 0 : index
    %c0_50 = arith.constant 0 : index
    %69 = vector.load %arg19[%c0_49, %c0_50] : memref<2x8xf32, #tpu.memory_space<vmem>>, vector<2x8xf32>
    tpu.vector_store %arg19[%c0_49, %c0_50], %68 {strides = array<i32>} : memref<2x8xf32, #tpu.memory_space<vmem>>, vector<2x8xf32>,
    return
  }
  func.func @transform_0(%arg0: i32) -> (i32, i32) {
    %c0_i32 = arith.constant 0 : i32
    %c0_i32_0 = arith.constant 0 : i32
    return %c0_i32, %arg0 : i32, i32
  }
  func.func @transform_1(%arg0: i32) -> (i32, i32) {
    %c0_i32 = arith.constant 0 : i32
    %c0_i32_0 = arith.constant 0 : i32
    return %c0_i32, %arg0 : i32, i32
  }
  func.func @transform_2(%arg0: i32) -> (i32, i32) {
    %c0_i32 = arith.constant 0 : i32
    %c0_i32_0 = arith.constant 0 : i32
    return %c0_i32, %arg0 : i32, i32
  }
  func.func @transform_3(%arg0: i32) -> (i32, i32) {
    %c0_i32 = arith.constant 0 : i32
    %c0_i32_0 = arith.constant 0 : i32
    return %c0_i32, %arg0 : i32, i32
  }
  func.func @transform_4(%arg0: i32) -> (i32, i32) {
    %c0_i32 = arith.constant 0 : i32
    %c0_i32_0 = arith.constant 0 : i32
    %c0_i32_1 = arith.constant 0 : i32
    return %c0_i32, %c0_i32_0 : i32, i32
  }
  func.func @transform_5(%arg0: i32) -> (i32, i32) {
    %c0_i32 = arith.constant 0 : i32
    %c0_i32_0 = arith.constant 0 : i32
    %c0_i32_1 = arith.constant 0 : i32
    return %c0_i32, %c0_i32_0 : i32, i32
  }
  func.func @transform_6(%arg0: i32) -> (i32, i32) {
    %c0_i32 = arith.constant 0 : i32
    %c0_i32_0 = arith.constant 0 : i32
    %c0_i32_1 = arith.constant 0 : i32
    return %c0_i32, %c0_i32_0 : i32, i32
  }
  func.func @transform_7(%arg0: i32) -> (i32, i32) {
    %c0_i32 = arith.constant 0 : i32
    %c0_i32_0 = arith.constant 0 : i32
    %c0_i32_1 = arith.constant 0 : i32
    return %c0_i32, %c0_i32_0 : i32, i32
  }
  func.func @transform_8(%arg0: i32) -> (i32, i32) {
    %c0_i32 = arith.constant 0 : i32
    %c0_i32_0 = arith.constant 0 : i32
    %c0_i32_1 = arith.constant 0 : i32
    return %c0_i32, %c0_i32_0 : i32, i32
  }
  func.func @transform_9(%arg0: i32) -> (i32, i32) {
    %c0_i32 = arith.constant 0 : i32
    %c0_i32_0 = arith.constant 0 : i32
    %c0_i32_1 = arith.constant 0 : i32
    return %c0_i32, %c0_i32_0 : i32, i32
  }
  func.func @transform_10(%arg0: i32) -> (i32, i32) {
    %c0_i32 = arith.constant 0 : i32
    %c0_i32_0 = arith.constant 0 : i32
    %c0_i32_1 = arith.constant 0 : i32
    return %c0_i32, %c0_i32_0 : i32, i32
  }
  func.func @transform_11(%arg0: i32) -> (i32, i32) {
    %c0_i32 = arith.constant 0 : i32
    %c0_i32_0 = arith.constant 0 : i32
    %c0_i32_1 = arith.constant 0 : i32
    return %c0_i32, %c0_i32_0 : i32, i32
  }
  func.func @transform_12(%arg0: i32) -> (i32, i32) {
    %c0_i32 = arith.constant 0 : i32
    %c0_i32_0 = arith.constant 0 : i32
    %c0_i32_1 = arith.constant 0 : i32
    return %c0_i32, %c0_i32_0 : i32, i32
  }
  func.func @transform_13(%arg0: i32) -> (i32, i32) {
    %c0_i32 = arith.constant 0 : i32
    %c0_i32_0 = arith.constant 0 : i32
    %c0_i32_1 = arith.constant 0 : i32
    return %c0_i32, %c0_i32_0 : i32, i32
  }
  func.func @transform_14(%arg0: i32) -> (i32, i32) {
    %c0_i32 = arith.constant 0 : i32
    %c0_i32_0 = arith.constant 0 : i32
    %c0_i32_1 = arith.constant 0 : i32
    return %c0_i32, %c0_i32_0 : i32, i32
  }
  func.func @transform_15(%arg0: i32) -> (i32, i32) {
    %c0_i32 = arith.constant 0 : i32
    %c0_i32_0 = arith.constant 0 : i32
    %c0_i32_1 = arith.constant 0 : i32
    return %c0_i32, %c0_i32_0 : i32, i32
  }
  func.func @transform_16(%arg0: i32) -> (i32, i32) {
    %c0_i32 = arith.constant 0 : i32
    %c0_i32_0 = arith.constant 0 : i32
    return %c0_i32, %arg0 : i32, i32
  }
  func.func @transform_17(%arg0: i32) -> (i32, i32) {
    %c0_i32 = arith.constant 0 : i32
    %c0_i32_0 = arith.constant 0 : i32
    return %c0_i32, %arg0 : i32, i32
  }
  func.func @transform_18(%arg0: i32) -> (i32, i32) {
    %c0_i32 = arith.constant 0 : i32
    %c0_i32_0 = arith.constant 0 : i32
    return %c0_i32, %arg0 : i32, i32
  }
}

</mosaic_0001>

<llo_original>
// kernel: tpu_custom_call.1
$region0: #{tpu_custom_call.1}
  #allocation0 [shape = 'u32[]', space=smem, size = 0x4, offset = 0x4, fixed_abs, tag = 'smem constant byte address 0x4 - core index']
  #allocation1 [shape = 'u32[144,128]{1,0:T(1,128)}', space=vmem, size = 0x12000, scoped, tag = 'internal scratch']
  %s0 = inlined_call_operand.vmem [shape: f32[16,8], index: 0, kind: input, shape index: {}]
  %s1 = inlined_call_operand.vmem [shape: f32[8,8], index: 1, kind: input, shape index: {}]
  %s2 = inlined_call_operand.vmem [shape: f32[4,8], index: 2, kind: input, shape index: {}]
  %s3 = inlined_call_operand.vmem [shape: f32[2,8], index: 3, kind: input, shape index: {}]
  %s4 = inlined_call_operand.vmem [shape: bf16[8,16], index: 4, kind: input, shape index: {}]
  %s5 = inlined_call_operand.vmem [shape: f32[8,1], index: 5, kind: input, shape index: {}]
  %s6 = inlined_call_operand.vmem [shape: bf16[8,8], index: 6, kind: input, shape index: {}]
  %s7 = inlined_call_operand.vmem [shape: f32[8,1], index: 7, kind: input, shape index: {}]
  %s8 = inlined_call_operand.vmem [shape: bf16[4,8], index: 8, kind: input, shape index: {}]
  %s9 = inlined_call_operand.vmem [shape: f32[4,1], index: 9, kind: input, shape index: {}]
  %s10 = inlined_call_operand.vmem [shape: bf16[4,4], index: 10, kind: input, shape index: {}]
  %s11 = inlined_call_operand.vmem [shape: f32[4,1], index: 11, kind: input, shape index: {}]
  %s12 = inlined_call_operand.vmem [shape: bf16[2,4], index: 12, kind: input, shape index: {}]
  %s13 = inlined_call_operand.vmem [shape: f32[2,1], index: 13, kind: input, shape index: {}]
  %s14 = inlined_call_operand.vmem [shape: bf16[2,2], index: 14, kind: input, shape index: {}]
  %s15 = inlined_call_operand.vmem [shape: f32[2,1], index: 15, kind: input, shape index: {}]
  %s16 = inlined_call_operand.hbm [shape: f32[8,8], index: 16, kind: output, shape index: {0}]
  %s17 = inlined_call_operand.hbm [shape: f32[4,8], index: 17, kind: output, shape index: {1}]
  %s18 = inlined_call_operand.hbm [shape: f32[2,8], index: 18, kind: output, shape index: {2}]
  %19 = xla_tuple %s16, %s17, %s18
  %s20 = sld [smem:[#allocation0]]
  $region90: #{tpu_custom_call.1} parent=0
    _
  %s22 = ssub.s32 1, %s20
  %s23 = scalar_select 0, %s22, %s20
  $region1: #{tpu_custom_call.1} parent=0
    #allocation2 [shape = 'u8[4096]{0}', space=vmem, size = 0x1000, scoped, tag = 'output window, operand 0, single buffered']
    #allocation3 [shape = 's32[1]{0}', space=sflag, size = 0x4, scoped, tag = 'scoped memory for tpu_custom_call.1']
    #allocation4 [shape = 'u8[2048]{0}', space=vmem, size = 0x800, scoped, tag = 'output window, operand 1, single buffered']
    #allocation5 [shape = 's32[1]{0}', space=sflag, size = 0x4, scoped, tag = 'scoped memory for tpu_custom_call.1']
    #allocation6 [shape = 'u8[1024]{0}', space=vmem, size = 0x400, scoped, tag = 'output window, operand 2, single buffered']
    %24 = vsyncpa [#allocation3], 0
    %25 = vsyncpa [#allocation5], 0
    // Predicated region
    $region2: #{tpu_custom_call.1} parent=1 // pred_check
      _
    $region3: #{tpu_custom_call.1} parent=1 // pred_check_branch
      %27 = sbr.rel (0) target = $region5
    $region4: #{tpu_custom_call.1} parent=1 // pred_region
      _
    $region5: #{tpu_custom_call.1} parent=1 // pred_fallthru
      _
    // Predicated region
    $region6: #{tpu_custom_call.1} parent=1 // pred_check
      _
    $region7: #{tpu_custom_call.1} parent=1 // pred_check_branch
      %29 = sbr.rel (0) target = $region9
    $region8: #{tpu_custom_call.1} parent=1 // pred_region
      _
    $region9: #{tpu_custom_call.1} parent=1 // pred_fallthru
      _
    // Predicated region
    $region10: #{tpu_custom_call.1} parent=1 // pred_check
      _
    $region11: #{tpu_custom_call.1} parent=1 // pred_check_branch
      %31 = sbr.rel (0) target = $region13
    $region12: #{tpu_custom_call.1} parent=1 // pred_region
      _
    $region13: #{tpu_custom_call.1} parent=1 // pred_fallthru
      _
    // Predicated region
    $region14: #{tpu_custom_call.1} parent=1 // pred_check
      _
    $region15: #{tpu_custom_call.1} parent=1 // pred_check_branch
      %33 = sbr.rel (0) target = $region17
    $region16: #{tpu_custom_call.1} parent=1 // pred_region
      _
    $region17: #{tpu_custom_call.1} parent=1 // pred_fallthru
      _
    // Predicated region
    $region18: #{tpu_custom_call.1} parent=1 // pred_check
      _
    $region19: #{tpu_custom_call.1} parent=1 // pred_check_branch
      %35 = sbr.rel (0) target = $region21
    $region20: #{tpu_custom_call.1} parent=1 // pred_region
      _
    $region21: #{tpu_custom_call.1} parent=1 // pred_fallthru
      _
    // Predicated region
    $region22: #{tpu_custom_call.1} parent=1 // pred_check
      _
    $region23: #{tpu_custom_call.1} parent=1 // pred_check_branch
      %37 = sbr.rel (0) target = $region25
    $region24: #{tpu_custom_call.1} parent=1 // pred_region
      _
    $region25: #{tpu_custom_call.1} parent=1 // pred_fallthru
      _
    // Predicated region
    $region26: #{tpu_custom_call.1} parent=1 // pred_check
      _
    $region27: #{tpu_custom_call.1} parent=1 // pred_check_branch
      %39 = sbr.rel (0) target = $region29
    $region28: #{tpu_custom_call.1} parent=1 // pred_region
      _
    $region29: #{tpu_custom_call.1} parent=1 // pred_fallthru
      _
    // Predicated region
    $region30: #{tpu_custom_call.1} parent=1 // pred_check
      _
    $region31: #{tpu_custom_call.1} parent=1 // pred_check_branch
      %41 = sbr.rel (0) target = $region33
    $region32: #{tpu_custom_call.1} parent=1 // pred_region
      _
    $region33: #{tpu_custom_call.1} parent=1 // pred_fallthru
      _
    // Predicated region
    $region34: #{tpu_custom_call.1} parent=1 // pred_check
      _
    $region35: #{tpu_custom_call.1} parent=1 // pred_check_branch
      %43 = sbr.rel (0) target = $region37
    $region36: #{tpu_custom_call.1} parent=1 // pred_region
      _
    $region37: #{tpu_custom_call.1} parent=1 // pred_fallthru
      _
    // Predicated region
    $region38: #{tpu_custom_call.1} parent=1 // pred_check
      _
    $region39: #{tpu_custom_call.1} parent=1 // pred_check_branch
      %45 = sbr.rel (0) target = $region41
    $region40: #{tpu_custom_call.1} parent=1 // pred_region
      _
    $region41: #{tpu_custom_call.1} parent=1 // pred_fallthru
      _
    // Predicated region
    $region42: #{tpu_custom_call.1} parent=1 // pred_check
      _
    $region43: #{tpu_custom_call.1} parent=1 // pred_check_branch
      %47 = sbr.rel (0) target = $region45
    $region44: #{tpu_custom_call.1} parent=1 // pred_region
      _
    $region45: #{tpu_custom_call.1} parent=1 // pred_fallthru
      _
    // Predicated region
    $region46: #{tpu_custom_call.1} parent=1 // pred_check
      _
    $region47: #{tpu_custom_call.1} parent=1 // pred_check_branch
      %49 = sbr.rel (0) target = $region49
    $region48: #{tpu_custom_call.1} parent=1 // pred_region
      _
    $region49: #{tpu_custom_call.1} parent=1 // pred_fallthru
      _
    // Predicated region
    $region50: #{tpu_custom_call.1} parent=1 // pred_check
      _
    $region51: #{tpu_custom_call.1} parent=1 // pred_check_branch
      %51 = sbr.rel (0) target = $region53
    $region52: #{tpu_custom_call.1} parent=1 // pred_region
      _
    $region53: #{tpu_custom_call.1} parent=1 // pred_fallthru
      _
    // Predicated region
    $region54: #{tpu_custom_call.1} parent=1 // pred_check
      _
    $region55: #{tpu_custom_call.1} parent=1 // pred_check_branch
      %53 = sbr.rel (0) target = $region57
    $region56: #{tpu_custom_call.1} parent=1 // pred_region
      _
    $region57: #{tpu_custom_call.1} parent=1 // pred_fallthru
      _
    // Predicated region
    $region58: #{tpu_custom_call.1} parent=1 // pred_check
      _
    $region59: #{tpu_custom_call.1} parent=1 // pred_check_branch
      %55 = sbr.rel (0) target = $region61
    $region60: #{tpu_custom_call.1} parent=1 // pred_region
      _
    $region61: #{tpu_custom_call.1} parent=1 // pred_fallthru
      _
    // Predicated region
    $region62: #{tpu_custom_call.1} parent=1 // pred_check
      _
    $region63: #{tpu_custom_call.1} parent=1 // pred_check_branch
      %57 = sbr.rel (0) target = $region65
    $region64: #{tpu_custom_call.1} parent=1 // pred_region
      _
    $region65: #{tpu_custom_call.1} parent=1 // pred_fallthru
      _
    %v59 = vld [vmem:[%s0] sm:$0xff]
    %v60 = vld [vmem:[%s0 + $0x8] sm:$0xff]
    %v61 = vld [vmem:[%s4] sm:$0xf]
    %v62 = vld [vmem:[%s5] sm:$0xff]
    %v63 = vld [vmem:[%s6] sm:$0xf]
    %v64 = vld [vmem:[%s7] sm:$0xff]
    %v65 = vpack.c.bf16 %v60, %v59
    %67 = vset.pattern.permute.xlu0 0
    %68 = vperm.xlu0 %67, %v62
    %v69 = vpop.permute.xlu0 %68
    %vm71 = vcmask 130048
    %v73 = vsel %vm71, %v61, 0
    %75 = vmatprep.subr.bf16.mxu0 0
    %76 = vmatpush1.bf16.msra.mxu0 0
    %77 = vmatprep.subr.bf16.mxu0 0
    %78 = vmatpush1.bf16.msra.mxu0 0
    %79 = vmatprep.subr.bf16.mxu0 0
    %80 = vmatpush1.bf16.msra.mxu0 0
    %81 = vmatprep.subr.bf16.mxu0 0
    %82 = vmatpush1.bf16.msra.mxu0 0
    %83 = vmatprep.subr.bf16.mxu0 0
    %84 = vmatpush1.bf16.msra.mxu0 0
    %85 = vmatprep.subr.bf16.mxu0 0
    %86 = vmatpush1.bf16.msra.mxu0 0
    %87 = vmatprep.subr.bf16.mxu0 0
    %88 = vmatpush1.bf16.msra.mxu0 0
    %89 = vmatprep.subr.bf16.mxu0 0
    %90 = vmatpush1.bf16.msra.mxu0 %v65
    %91 = vmatprep.subr.bf16.mxu0 0
    %92 = vmatpush2.bf16.msra.mxu0 0
    %93 = vmatprep.subr.bf16.mxu0 0
    %94 = vmatpush2.bf16.msra.mxu0 0
    %95 = vmatprep.subr.bf16.mxu0 0
    %96 = vmatpush2.bf16.msra.mxu0 0
    %97 = vmatprep.subr.bf16.mxu0 0
    %98 = vmatpush2.bf16.msra.mxu0 0
    %99 = vmatprep.subr.bf16.mxu0 0
    %100 = vmatpush2.bf16.msra.mxu0 0
    %101 = vmatprep.subr.bf16.mxu0 0
    %102 = vmatpush2.bf16.msra.mxu0 0
    %103 = vmatprep.subr.bf16.mxu0 0
    %104 = vmatpush2.bf16.msra.mxu0 0
    %105 = vmatprep.subr.bf16.mxu0 0
    %106 = vmatpush2.bf16.msra.mxu0 0
    %107 = vmatprep.mubr.bf16.mxu0 0
    %108 = vmatmul.mubr.bf16.gmra.mxu0 %v73
    %v109 = vpop.f32.mrf.mxu0
    %v110 = vadd.f32 %v69, %v109
    %v111 = vpop.f32.mrf.mxu0
    %v112 = vpop.f32.mrf.mxu0
    %v113 = vpop.f32.mrf.mxu0
    %114 = vdwg.mxu0
    %v115 = vmul.f32 %v110, 0.5
    %v116 = vmul.f32 %v110, 0.70710677
    %v117 = verf.f32.pop %v116
    %v118 = vadd.f32 %v117, 1.0
    %v119 = vmul.f32 %v115, %v118
    %v120 = vpack.c.bf16 %v119, %v119
    %122 = vset.pattern.permute.xlu0 0
    %123 = vperm.xlu0 %122, %v64
    %v124 = vpop.permute.xlu0 %123
    %vm126 = vcmask 64512
    %v128 = vsel %vm126, %v63, 0
    %vm130 = vcmask 1043456
    %v132 = vsel %vm130, %v120, 0
    %134 = vmatprep.subr.bf16.mxu0 0
    %135 = vmatpush1.bf16.msra.mxu0 0
    %136 = vmatprep.subr.bf16.mxu0 0
    %137 = vmatpush1.bf16.msra.mxu0 0
    %138 = vmatprep.subr.bf16.mxu0 0
    %139 = vmatpush1.bf16.msra.mxu0 0
    %140 = vmatprep.subr.bf16.mxu0 0
    %141 = vmatpush1.bf16.msra.mxu0 0
    %142 = vmatprep.subr.bf16.mxu0 0
    %143 = vmatpush1.bf16.msra.mxu0 0
    %144 = vmatprep.subr.bf16.mxu0 0
    %145 = vmatpush1.bf16.msra.mxu0 0
    %146 = vmatprep.subr.bf16.mxu0 0
    %147 = vmatpush1.bf16.msra.mxu0 0
    %148 = vmatprep.subr.bf16.mxu0 0
    %149 = vmatpush1.bf16.msra.mxu0 %v132
    %150 = vmatprep.subr.bf16.mxu0 0
    %151 = vmatpush2.bf16.msra.mxu0 0
    %152 = vmatprep.subr.bf16.mxu0 0
    %153 = vmatpush2.bf16.msra.mxu0 0
    %154 = vmatprep.subr.bf16.mxu0 0
    %155 = vmatpush2.bf16.msra.mxu0 0
    %156 = vmatprep.subr.bf16.mxu0 0
    %157 = vmatpush2.bf16.msra.mxu0 0
    %158 = vmatprep.subr.bf16.mxu0 0
    %159 = vmatpush2.bf16.msra.mxu0 0
    %160 = vmatprep.subr.bf16.mxu0 0
    %161 = vmatpush2.bf16.msra.mxu0 0
    %162 = vmatprep.subr.bf16.mxu0 0
    %163 = vmatpush2.bf16.msra.mxu0 0
    %164 = vmatprep.subr.bf16.mxu0 0
    %165 = vmatpush2.bf16.msra.mxu0 0
    %166 = vmatprep.mubr.bf16.mxu0 0
    %167 = vmatmul.mubr.bf16.gmra.mxu0 %v128
    %v168 = vpop.f32.mrf.mxu0
    %v169 = vadd.f32 %v124, %v168
    %v170 = vpop.f32.mrf.mxu0
    %v171 = vpop.f32.mrf.mxu0
    %v172 = vpop.f32.mrf.mxu0
    %173 = vdwg.mxu0
    %v174 = vld [vmem:[%s1] sm:$0xff]
    %v175 = vadd.f32 %v174, %v169
    %176 = vst.msk [vmem:[#allocation2] sm:$0xff] %vm126, %v175
    %v177 = vld [vmem:[%s8] sm:$0x3]
    %v178 = vld [vmem:[%s9] sm:$0xf]
    %v179 = vld [vmem:[%s10] sm:$0x3]
    %v180 = vld [vmem:[%s11] sm:$0xf]
    %v181 = vpack.c.bf16 %v175, %v175
    %183 = vset.pattern.permute.xlu0 0
    %184 = vperm.xlu0 %183, %v178
    %v185 = vpop.permute.xlu0 %184
    %v188 = vsel %vm126, %v177, 0
    %v191 = vsel %vm130, %v181, 0
    %193 = vmatprep.subr.bf16.mxu0 0
    %194 = vmatpush1.bf16.msra.mxu0 0
    %195 = vmatprep.subr.bf16.mxu0 0
    %196 = vmatpush1.bf16.msra.mxu0 0
    %197 = vmatprep.subr.bf16.mxu0 0
    %198 = vmatpush1.bf16.msra.mxu0 0
    %199 = vmatprep.subr.bf16.mxu0 0
    %200 = vmatpush1.bf16.msra.mxu0 0
    %201 = vmatprep.subr.bf16.mxu0 0
    %202 = vmatpush1.bf16.msra.mxu0 0
    %203 = vmatprep.subr.bf16.mxu0 0
    %204 = vmatpush1.bf16.msra.mxu0 0
    %205 = vmatprep.subr.bf16.mxu0 0
    %206 = vmatpush1.bf16.msra.mxu0 0
    %207 = vmatprep.subr.bf16.mxu0 0
    %208 = vmatpush1.bf16.msra.mxu0 %v191
    %209 = vmatprep.subr.bf16.mxu0 0
    %210 = vmatpush2.bf16.msra.mxu0 0
    %211 = vmatprep.subr.bf16.mxu0 0
    %212 = vmatpush2.bf16.msra.mxu0 0
    %213 = vmatprep.subr.bf16.mxu0 0
    %214 = vmatpush2.bf16.msra.mxu0 0
    %215 = vmatprep.subr.bf16.mxu0 0
    %216 = vmatpush2.bf16.msra.mxu0 0
    %217 = vmatprep.subr.bf16.mxu0 0
    %218 = vmatpush2.bf16.msra.mxu0 0
    %219 = vmatprep.subr.bf16.mxu0 0
    %220 = vmatpush2.bf16.msra.mxu0 0
    %221 = vmatprep.subr.bf16.mxu0 0
    %222 = vmatpush2.bf16.msra.mxu0 0
    %223 = vmatprep.subr.bf16.mxu0 0
    %224 = vmatpush2.bf16.msra.mxu0 0
    %225 = vmatprep.mubr.bf16.mxu0 0
    %226 = vmatmul.mubr.bf16.gmra.mxu0 %v188
    %v227 = vpop.f32.mrf.mxu0
    %v228 = vadd.f32 %v185, %v227
    %v229 = vpop.f32.mrf.mxu0
    %v230 = vpop.f32.mrf.mxu0
    %v231 = vpop.f32.mrf.mxu0
    %232 = vdwg.mxu0
    %v233 = vmul.f32 %v228, 0.5
    %v234 = vmul.f32 %v228, 0.70710677
    %v235 = verf.f32.pop %v234
    %v236 = vadd.f32 %v235, 1.0
    %v237 = vmul.f32 %v233, %v236
    %v238 = vpack.c.bf16 %v237, %v237
    %240 = vset.pattern.permute.xlu0 0
    %241 = vperm.xlu0 %240, %v180
    %v242 = vpop.permute.xlu0 %241
    %vm244 = vcmask 31744
    %v246 = vsel %vm244, %v179, 0
    %vm248 = vcmask 1041408
    %v250 = vsel %vm248, %v238, 0
    %252 = vmatprep.subr.bf16.mxu0 0
    %253 = vmatpush1.bf16.msra.mxu0 0
    %254 = vmatprep.subr.bf16.mxu0 0
    %255 = vmatpush1.bf16.msra.mxu0 0
    %256 = vmatprep.subr.bf16.mxu0 0
    %257 = vmatpush1.bf16.msra.mxu0 0
    %258 = vmatprep.subr.bf16.mxu0 0
    %259 = vmatpush1.bf16.msra.mxu0 0
    %260 = vmatprep.subr.bf16.mxu0 0
    %261 = vmatpush1.bf16.msra.mxu0 0
    %262 = vmatprep.subr.bf16.mxu0 0
    %263 = vmatpush1.bf16.msra.mxu0 0
    %264 = vmatprep.subr.bf16.mxu0 0
    %265 = vmatpush1.bf16.msra.mxu0 0
    %266 = vmatprep.subr.bf16.mxu0 0
    %267 = vmatpush1.bf16.msra.mxu0 %v250
    %268 = vmatprep.subr.bf16.mxu0 0
    %269 = vmatpush2.bf16.msra.mxu0 0
    %270 = vmatprep.subr.bf16.mxu0 0
    %271 = vmatpush2.bf16.msra.mxu0 0
    %272 = vmatprep.subr.bf16.mxu0 0
    %273 = vmatpush2.bf16.msra.mxu0 0
    %274 = vmatprep.subr.bf16.mxu0 0
    %275 = vmatpush2.bf16.msra.mxu0 0
    %276 = vmatprep.subr.bf16.mxu0 0
    %277 = vmatpush2.bf16.msra.mxu0 0
    %278 = vmatprep.subr.bf16.mxu0 0
    %279 = vmatpush2.bf16.msra.mxu0 0
    %280 = vmatprep.subr.bf16.mxu0 0
    %281 = vmatpush2.bf16.msra.mxu0 0
    %282 = vmatprep.subr.bf16.mxu0 0
    %283 = vmatpush2.bf16.msra.mxu0 0
    %284 = vmatprep.mubr.bf16.mxu0 0
    %285 = vmatmul.mubr.bf16.gmra.mxu0 %v246
    %v286 = vpop.f32.mrf.mxu0
    %v287 = vadd.f32 %v242, %v286
    %v288 = vpop.f32.mrf.mxu0
    %v289 = vpop.f32.mrf.mxu0
    %v290 = vpop.f32.mrf.mxu0
    %291 = vdwg.mxu0
    %v292 = vld [vmem:[%s2] sm:$0xf]
    %v293 = vadd.f32 %v292, %v287
    %vm294 = vcmask 60416
    %295 = vst.msk [vmem:[#allocation4] sm:$0xf] %vm294, %v293
    %v296 = vld [vmem:[%s12] sm:$0x1]
    %v297 = vld [vmem:[%s13] sm:$0x3]
    %v298 = vld [vmem:[%s14] sm:$0x1]
    %v299 = vld [vmem:[%s15] sm:$0x3]
    %v300 = vpack.c.bf16 %v293, %v293
    %302 = vset.pattern.permute.xlu0 0
    %303 = vperm.xlu0 %302, %v297
    %v304 = vpop.permute.xlu0 %303
    %v307 = vsel %vm244, %v296, 0
    %v310 = vsel %vm248, %v300, 0
    %312 = vmatprep.subr.bf16.mxu0 0
    %313 = vmatpush1.bf16.msra.mxu0 0
    %314 = vmatprep.subr.bf16.mxu0 0
    %315 = vmatpush1.bf16.msra.mxu0 0
    %316 = vmatprep.subr.bf16.mxu0 0
    %317 = vmatpush1.bf16.msra.mxu0 0
    %318 = vmatprep.subr.bf16.mxu0 0
    %319 = vmatpush1.bf16.msra.mxu0 0
    %320 = vmatprep.subr.bf16.mxu0 0
    %321 = vmatpush1.bf16.msra.mxu0 0
    %322 = vmatprep.subr.bf16.mxu0 0
    %323 = vmatpush1.bf16.msra.mxu0 0
    %324 = vmatprep.subr.bf16.mxu0 0
    %325 = vmatpush1.bf16.msra.mxu0 0
    %326 = vmatprep.subr.bf16.mxu0 0
    %327 = vmatpush1.bf16.msra.mxu0 %v310
    %328 = vmatprep.subr.bf16.mxu0 0
    %329 = vmatpush2.bf16.msra.mxu0 0
    %330 = vmatprep.subr.bf16.mxu0 0
    %331 = vmatpush2.bf16.msra.mxu0 0
    %332 = vmatprep.subr.bf16.mxu0 0
    %333 = vmatpush2.bf16.msra.mxu0 0
    %334 = vmatprep.subr.bf16.mxu0 0
    %335 = vmatpush2.bf16.msra.mxu0 0
    %336 = vmatprep.subr.bf16.mxu0 0
    %337 = vmatpush2.bf16.msra.mxu0 0
    %338 = vmatprep.subr.bf16.mxu0 0
    %339 = vmatpush2.bf16.msra.mxu0 0
    %340 = vmatprep.subr.bf16.mxu0 0
    %341 = vmatpush2.bf16.msra.mxu0 0
    %342 = vmatprep.subr.bf16.mxu0 0
    %343 = vmatpush2.bf16.msra.mxu0 0
    %344 = vmatprep.mubr.bf16.mxu0 0
    %345 = vmatmul.mubr.bf16.gmra.mxu0 %v307
    %v346 = vpop.f32.mrf.mxu0
    %v347 = vadd.f32 %v304, %v346
    %v348 = vpop.f32.mrf.mxu0
    %v349 = vpop.f32.mrf.mxu0
    %v350 = vpop.f32.mrf.mxu0
    %351 = vdwg.mxu0
    %v352 = vmul.f32 %v347, 0.5
    %v353 = vmul.f32 %v347, 0.70710677
    %v354 = verf.f32.pop %v353
    %v355 = vadd.f32 %v354, 1.0
    %v356 = vmul.f32 %v352, %v355
    %v357 = vpack.c.bf16 %v356, %v356
    %359 = vset.pattern.permute.xlu0 0
    %360 = vperm.xlu0 %359, %v299
    %v361 = vpop.permute.xlu0 %360
    %vm363 = vcmask 15360
    %v365 = vsel %vm363, %v298, 0
    %vm367 = vcmask 1040384
    %v369 = vsel %vm367, %v357, 0
    %371 = vmatprep.subr.bf16.mxu0 0
    %372 = vmatpush1.bf16.msra.mxu0 0
    %373 = vmatprep.subr.bf16.mxu0 0
    %374 = vmatpush1.bf16.msra.mxu0 0
    %375 = vmatprep.subr.bf16.mxu0 0
    %376 = vmatpush1.bf16.msra.mxu0 0
    %377 = vmatprep.subr.bf16.mxu0 0
    %378 = vmatpush1.bf16.msra.mxu0 0
    %379 = vmatprep.subr.bf16.mxu0 0
    %380 = vmatpush1.bf16.msra.mxu0 0
    %381 = vmatprep.subr.bf16.mxu0 0
    %382 = vmatpush1.bf16.msra.mxu0 0
    %383 = vmatprep.subr.bf16.mxu0 0
    %384 = vmatpush1.bf16.msra.mxu0 0
    %385 = vmatprep.subr.bf16.mxu0 0
    %386 = vmatpush1.bf16.msra.mxu0 %v369
    %387 = vmatprep.subr.bf16.mxu0 0
    %388 = vmatpush2.bf16.msra.mxu0 0
    %389 = vmatprep.subr.bf16.mxu0 0
    %390 = vmatpush2.bf16.msra.mxu0 0
    %391 = vmatprep.subr.bf16.mxu0 0
    %392 = vmatpush2.bf16.msra.mxu0 0
    %393 = vmatprep.subr.bf16.mxu0 0
    %394 = vmatpush2.bf16.msra.mxu0 0
    %395 = vmatprep.subr.bf16.mxu0 0
    %396 = vmatpush2.bf16.msra.mxu0 0
    %397 = vmatprep.subr.bf16.mxu0 0
    %398 = vmatpush2.bf16.msra.mxu0 0
    %399 = vmatprep.subr.bf16.mxu0 0
    %400 = vmatpush2.bf16.msra.mxu0 0
    %401 = vmatprep.subr.bf16.mxu0 0
    %402 = vmatpush2.bf16.msra.mxu0 0
    %403 = vmatprep.mubr.bf16.mxu0 0
    %404 = vmatmul.mubr.bf16.gmra.mxu0 %v365
    %v405 = vpop.f32.mrf.mxu0
    %v406 = vadd.f32 %v361, %v405
    %v407 = vpop.f32.mrf.mxu0
    %v408 = vpop.f32.mrf.mxu0
    %v409 = vpop.f32.mrf.mxu0
    %410 = vdwg.mxu0
    %v411 = vld [vmem:[%s3] sm:$0x3]
    %v412 = vadd.f32 %v411, %v406
    %vm413 = vcmask 58368
    %414 = vst.msk [vmem:[#allocation6] sm:$0x3] %vm413, %v412
    // Predicated region
    $region66: #{tpu_custom_call.1} parent=1 // pred_check
      _
    $region67: #{tpu_custom_call.1} parent=1 // pred_check_branch
      %416 = sbr.rel (0) target = $region69
    $region68: #{tpu_custom_call.1} parent=1 // pred_region
      %s418 = ssub.s32 128, 128
      %419 = vsyncadd [#allocation3], %s418
      %s421 = sshll.u32 [#allocation2], 4
      %s422 = int_to_ptr.vmem [resolvable:$true] %s421
      %424 = dma.vmem_to_hbm [thread:$0]  %s422, 128, %s16, [#allocation3]
    $region69: #{tpu_custom_call.1} parent=1 // pred_fallthru
      _
    // Predicated region
    $region70: #{tpu_custom_call.1} parent=1 // pred_check
      _
    $region71: #{tpu_custom_call.1} parent=1 // pred_check_branch
      %426 = sbr.rel (0) target = $region73
    $region72: #{tpu_custom_call.1} parent=1 // pred_region
      %s428 = ssub.s32 64, 64
      %429 = vsyncadd [#allocation5], %s428
      %s431 = sshll.u32 [#allocation4], 4
      %s432 = int_to_ptr.vmem [resolvable:$true] %s431
      %434 = dma.vmem_to_hbm [thread:$0]  %s432, 64, %s17, [#allocation5]
    $region73: #{tpu_custom_call.1} parent=1 // pred_fallthru
      _
    // Predicated region
    $region74: #{tpu_custom_call.1} parent=1 // pred_check
      _
    $region75: #{tpu_custom_call.1} parent=1 // pred_check_branch
      %436 = sbr.rel (0) target = $region77
    $region76: #{tpu_custom_call.1} parent=1 // pred_region
      %s438 = ssub.s32 32, 32
      %439 = vsyncadd [#allocation5], %s438
      %s441 = sshll.u32 [#allocation6], 4
      %s442 = int_to_ptr.vmem [resolvable:$true] %s441
      %444 = dma.vmem_to_hbm [thread:$0]  %s442, 32, %s18, [#allocation5]
    $region77: #{tpu_custom_call.1} parent=1 // pred_fallthru
      _
    // Predicated region
    $region78: #{tpu_custom_call.1} parent=1 // pred_check
      _
    $region79: #{tpu_custom_call.1} parent=1 // pred_check_branch
      %446 = sbr.rel (0) target = $region81
    $region80: #{tpu_custom_call.1} parent=1 // pred_region
      %447 = dma.done [#allocation3], 128
    $region81: #{tpu_custom_call.1} parent=1 // pred_fallthru
      _
    // Predicated region
    $region82: #{tpu_custom_call.1} parent=1 // pred_check
      _
    $region83: #{tpu_custom_call.1} parent=1 // pred_check_branch
      %449 = sbr.rel (0) target = $region85
    $region84: #{tpu_custom_call.1} parent=1 // pred_region
      %450 = dma.done [#allocation5], 64
    $region85: #{tpu_custom_call.1} parent=1 // pred_fallthru
      _
    // Predicated region
    $region86: #{tpu_custom_call.1} parent=1 // pred_check
      _
    $region87: #{tpu_custom_call.1} parent=1 // pred_check_branch
      %452 = sbr.rel (0) target = $region89
    $region88: #{tpu_custom_call.1} parent=1 // pred_region
      %453 = dma.done [#allocation5], 32
    $region89: #{tpu_custom_call.1} parent=1 // pred_fallthru
      _
    %454 = vsyncpa [#allocation3], 1
    %455 = vsyncpa [#allocation5], 1

</llo_original>
